<compile_context>
chip_gen: v5e
topology: v5e:2x2
jax: 0.10.0
libtpu: 0.0.40
codegen_flags: <defaults>
</compile_context>

<pallas_src>
import math

import jax
import jax.numpy as jnp
from jax.experimental import pallas as pl
from jax.experimental.pallas import tpu as pltpu

HIDDEN = 32          # hidden_dim
EXPANSION = 4        # expansion_factor


def _gelu_exact(x):
    # PyTorch nn.GELU() default = exact erf formulation
    return 0.5 * x * (1.0 + jax.lax.erf(x * (1.0 / math.sqrt(2.0))))


def _round_up(a, b):
    return (a + b - 1) // b * b


def mlp_kernel(x_ref, w1_ref, b1_ref, w2_ref, b2_ref, o_ref):
    # Hoist weights / biases once per grid step (avoid re-broadcast per expr).
    w1 = w1_ref[...]
    b1 = b1__f32 = b1_ref[...].astype(jnp.float32)
    w2 = w2_ref[...]
    b2 = b2_ref[...].astype(jnp.float32)

    x = x_ref[...]

    # fc1 -> GELU -> fc2, f32 accumulation on the MXU.
    h = jnp.dot(x, w1, preferred_element_type=jnp.float32) + b1_f32 if False else \
        jnp.dot(x, w1, preferred_element_type=jnp.float32) + b1
    h = _gelu_exact(h)
    y = jnp.dot(h.astype(w2.dtype), w2, preferred_element_type=jnp.float32) + b2

    o_ref[...] = y.astype(o_ref.dtype)


def mlp_forward(x, params, *, row_tile=2048):
    """x: (..., hidden). params: dict with w1 (H, E*H), b1 (1, E*H), w2 (E*H, H), b2 (1, H)."""
    assert x.ndim >= 2, "expected (..., hidden)"
    *lead, H = x.shape
    rows = math.prod(lead)
    x2 = x.reshape(rows, H)

    # Tile selection: as big as requested (amortize per-step overhead), but no
    # bigger than the padded problem; always a multiple of 8 (sublane rule).
    tile = min(_round_up(row_tile, 8), _round_up(rows, 8))
    rows_p = _round_up(rows, tile)
    if rows_p != rows:
        x2 = jnp.pad(x2, ((0, rows_p - rows), (0, 0)))
    grid = (rows_p // tile,)

    w1, b1, w2, b2 = params["w1"], params["b1"], params["w2"], params["b2"]

    def full_spec(a):
        nd = a.ndim
        return pl.BlockSpec(a.shape, lambda i, _nd=nd: (0,) * _nd)

    out2 = pl.pallas_call(
        mlp_kernel,
        out_shape=jax.ShapeDtypeStruct((rows_p, H), x.dtype),
        grid_spec=pl.GridSpec(
            grid=grid,
            in_specs=[
                pl.BlockSpec((tile, H), lambda i: (i, 0)),   # activations
                full_spec(w1), full_spec(b1),                # fc1
                full_spec(w2), full_spec(b2),                # fc2
            ],
            out_specs=pl.BlockSpec((tile, H), lambda i: (i, 0)),
        ),
        compiler_params=pltpu.CompilerParams(
            dimension_semantics=("parallel",)),
    )(x2, w1, b1, w2, b2)

    return out2[:rows].reshape(*lead, H)


def init_params(key, hidden=HIDDEN, expansion=EXPANSION):
    """Deterministic synthetic parameters; Linear weights stored as (in, out)."""
    ks = jax.random.split(key, 4)
    f32 = jnp.float32
    EH = hidden * expansion
    scale = 0.05
    return {
        "w1": scale * jax.random.normal(ks[0], (hidden, EH), f32),
        "b1": scale * jax.random.normal(ks[1], (1, EH), f32),
        "w2": scale * jax.random.normal(ks[2], (EH, hidden), f32),
        "b2": scale * jax.random.normal(ks[3], (1, hidden), f32),
    }


def mlp_ref(x, p):
    """Pure-JAX reference of the PyTorch MLP forward for validation."""
    h = _gelu_exact(x @ p["w1"] + p["b1"][0])
    return h @ p["w2"] + p["b2"][0]


if __name__ == "__main__":
    key = jax.random.PRNGKey(0)
    kx, kx2, kp = jax.random.split(key, 3)

    params = init_params(kp)

    # Small shape consistent with the module: (batch=2, seq=8, hidden=32).
    B, S, H = 2, 8, HIDDEN
    x = jax.random.normal(kx, (B, S, H), jnp.float32)
    out = jax.block_until_ready(mlp_forward(x, params))
    ref = mlp_ref(x, params)
    assert out.shape == (B, S, H)
    assert jnp.allclose(out, ref, atol=1e-4, rtol=1e-4), "mismatch vs reference (small)"

    # Second case exercising multi-step grid + row padding (rows=400, tile=128).
    xb = jax.random.normal(kx2, (4, 100, H), jnp.float32)
    outb = jax.block_until_ready(mlp_forward(xb, params, row_tile=128))
    refb = mlp_ref(xb, params)
    assert outb.shape == (4, 100, H)
    assert jnp.allclose(outb, refb, atol=1e-4, rtol=1e-4), "mismatch vs reference (padded)"

    print("KERNEL_OK")
</pallas_src>

<mosaic_0001>
module attributes {stable_mosaic.version = 11 : i64} {
  func.func @mlp_kernel(%arg0: i32, %arg1: memref<16x32xf32, #tpu.memory_space<vmem>>, %arg2: memref<32x128xf32, #tpu.memory_space<vmem>>, %arg3: memref<1x128xf32, #tpu.memory_space<vmem>>, %arg4: memref<128x32xf32, #tpu.memory_space<vmem>>, %arg5: memref<1x32xf32, #tpu.memory_space<vmem>>, %arg6: memref<16x32xf32, #tpu.memory_space<vmem>>) attributes {dimension_semantics = [#tpu.dimension_semantics<parallel>], iteration_bounds = array<i64: 1>, scalar_prefetch = 0 : i64, scratch_operands = 0 : i64, tpu.core_type = #tpu.core_type<tc>, window_params = [{transform_indices = @transform_0, window_bounds = array<i64: 16, 32>}, {pipeline_mode = #tpu.pipeline_mode<synchronous>, transform_indices = @transform_1, window_bounds = array<i64: 32, 128>}, {pipeline_mode = #tpu.pipeline_mode<synchronous>, transform_indices = @transform_2, window_bounds = array<i64: 1, 128>}, {pipeline_mode = #tpu.pipeline_mode<synchronous>, transform_indices = @transform_3, window_bounds = array<i64: 128, 32>}, {pipeline_mode = #tpu.pipeline_mode<synchronous>, transform_indices = @transform_4, window_bounds = array<i64: 1, 32>}, {transform_indices = @transform_5, window_bounds = array<i64: 16, 32>}]} {
    %c0 = arith.constant 0 : index
    %c0_0 = arith.constant 0 : index
    %0 = vector.load %arg2[%c0, %c0_0] : memref<32x128xf32, #tpu.memory_space<vmem>>, vector<32x128xf32>
    %c0_1 = arith.constant 0 : index
    %c0_2 = arith.constant 0 : index
    %1 = vector.load %arg3[%c0_1, %c0_2] : memref<1x128xf32, #tpu.memory_space<vmem>>, vector<1x128xf32>
    %c0_3 = arith.constant 0 : index
    %c0_4 = arith.constant 0 : index
    %2 = vector.load %arg4[%c0_3, %c0_4] : memref<128x32xf32, #tpu.memory_space<vmem>>, vector<128x32xf32>
    %c0_5 = arith.constant 0 : index
    %c0_6 = arith.constant 0 : index
    %3 = vector.load %arg5[%c0_5, %c0_6] : memref<1x32xf32, #tpu.memory_space<vmem>>, vector<1x32xf32>
    %c0_7 = arith.constant 0 : index
    %c0_8 = arith.constant 0 : index
    %4 = vector.load %arg1[%c0_7, %c0_8] : memref<16x32xf32, #tpu.memory_space<vmem>>, vector<16x32xf32>
    %cst = arith.constant dense<0.000000e+00> : vector<16x128xf32>
    %5 = tpu.matmul %4, %0, %cst {dimension_numbers = #tpu.dot_dimension_numbers<[1], [0], [0], [1], [0, 0, 1, 1], [], []>} : vector<16x32xf32>, vector<32x128xf32>, vector<16x128xf32> -> vector<16x128xf32>
    %6 = vector.broadcast %1 : vector<1x128xf32> to vector<16x128xf32>
    %7 = arith.addf %5, %6 : vector<16x128xf32>
    %cst_9 = arith.constant 5.000000e-01 : f32
    %8 = vector.broadcast %cst_9 : f32 to vector<16x128xf32>
    %9 = arith.mulf %8, %7 : vector<16x128xf32>
    %cst_10 = arith.constant 0.707106769 : f32
    %10 = vector.broadcast %cst_10 : f32 to vector<16x128xf32>
    %11 = arith.mulf %7, %10 : vector<16x128xf32>
    %12 = math.erf %11 : vector<16x128xf32>
    %cst_11 = arith.constant 1.000000e+00 : f32
    %13 = vector.broadcast %cst_11 : f32 to vector<16x128xf32>
    %14 = arith.addf %13, %12 : vector<16x128xf32>
    %15 = arith.mulf %9, %14 : vector<16x128xf32>
    %cst_12 = arith.constant dense<0.000000e+00> : vector<16x32xf32>
    %16 = tpu.matmul %15, %2, %cst_12 {dimension_numbers = #tpu.dot_dimension_numbers<[1], [0], [0], [1], [0, 0, 1, 1], [], []>} : vector<16x128xf32>, vector<128x32xf32>, vector<16x32xf32> -> vector<16x32xf32>
    %17 = vector.broadcast %3 : vector<1x32xf32> to vector<16x32xf32>
    %18 = arith.addf %16, %17 : vector<16x32xf32>
    %c0_13 = arith.constant 0 : index
    %c0_14 = arith.constant 0 : index
    %19 = vector.load %arg6[%c0_13, %c0_14] : memref<16x32xf32, #tpu.memory_space<vmem>>, vector<16x32xf32>
    tpu.vector_store %arg6[%c0_13, %c0_14], %18 {strides = array<i32>} : memref<16x32xf32, #tpu.memory_space<vmem>>, vector<16x32xf32>,
    return
  }
  func.func @transform_0(%arg0: i32) -> (i32, i32) {
    %c0_i32 = arith.constant 0 : i32
    %c0_i32_0 = arith.constant 0 : i32
    return %arg0, %c0_i32 : i32, i32
  }
  func.func @transform_1(%arg0: i32) -> (i32, i32) {
    %c0_i32 = arith.constant 0 : i32
    %c0_i32_0 = arith.constant 0 : i32
    %c0_i32_1 = arith.constant 0 : i32
    return %c0_i32, %c0_i32_0 : i32, i32
  }
  func.func @transform_2(%arg0: i32) -> (i32, i32) {
    %c0_i32 = arith.constant 0 : i32
    %c0_i32_0 = arith.constant 0 : i32
    %c0_i32_1 = arith.constant 0 : i32
    return %c0_i32, %c0_i32_0 : i32, i32
  }
  func.func @transform_3(%arg0: i32) -> (i32, i32) {
    %c0_i32 = arith.constant 0 : i32
    %c0_i32_0 = arith.constant 0 : i32
    %c0_i32_1 = arith.constant 0 : i32
    return %c0_i32, %c0_i32_0 : i32, i32
  }
  func.func @transform_4(%arg0: i32) -> (i32, i32) {
    %c0_i32 = arith.constant 0 : i32
    %c0_i32_0 = arith.constant 0 : i32
    %c0_i32_1 = arith.constant 0 : i32
    return %c0_i32, %c0_i32_0 : i32, i32
  }
  func.func @transform_5(%arg0: i32) -> (i32, i32) {
    %c0_i32 = arith.constant 0 : i32
    %c0_i32_0 = arith.constant 0 : i32
    return %arg0, %c0_i32 : i32, i32
  }
}

</mosaic_0001>

<llo_original>
// kernel: tpu_custom_call.1
$region0: #{tpu_custom_call.1}
  #allocation0 [shape = 'u32[]', space=smem, size = 0x4, offset = 0x4, fixed_abs, tag = 'smem constant byte address 0x4 - core index']
  #allocation1 [shape = 'u32[72,128]{1,0:T(1,128)}', space=vmem, size = 0x9000, scoped, tag = 'internal scratch']
  %s0 = inlined_call_operand.vmem [shape: f32[16,32], index: 0, kind: input, shape index: {}]
  %s1 = inlined_call_operand.vmem [shape: f32[32,128], index: 1, kind: input, shape index: {}]
  %s2 = inlined_call_operand.vmem [shape: f32[1,128], index: 2, kind: input, shape index: {}]
  %s3 = inlined_call_operand.vmem [shape: f32[128,32], index: 3, kind: input, shape index: {}]
  %s4 = inlined_call_operand.vmem [shape: f32[1,32], index: 4, kind: input, shape index: {}]
  %s5 = inlined_call_operand.hbm [shape: f32[16,32], index: 5, kind: output, shape index: {}]
  %s6 = sld [smem:[#allocation0]]
  $region30: #{tpu_custom_call.1} parent=0
    _
  %s8 = ssub.s32 1, %s6
  %s9 = scalar_select 0, %s8, %s6
  $region1: #{tpu_custom_call.1} parent=0
    #allocation2 [shape = 'u8[8192]{0}', space=vmem, size = 0x2000, scoped, tag = 'output window, operand 0, single buffered']
    #allocation3 [shape = 's32[1]{0}', space=sflag, size = 0x4, scoped, tag = 'scoped memory for tpu_custom_call.1']
    %10 = vsyncpa [#allocation3], 0
    // Predicated region
    $region2: #{tpu_custom_call.1} parent=1 // pred_check
      _
    $region3: #{tpu_custom_call.1} parent=1 // pred_check_branch
      %12 = sbr.rel (0) target = $region5
    $region4: #{tpu_custom_call.1} parent=1 // pred_region
      _
    $region5: #{tpu_custom_call.1} parent=1 // pred_fallthru
      _
    // Predicated region
    $region6: #{tpu_custom_call.1} parent=1 // pred_check
      _
    $region7: #{tpu_custom_call.1} parent=1 // pred_check_branch
      %14 = sbr.rel (0) target = $region9
    $region8: #{tpu_custom_call.1} parent=1 // pred_region
      _
    $region9: #{tpu_custom_call.1} parent=1 // pred_fallthru
      _
    // Predicated region
    $region10: #{tpu_custom_call.1} parent=1 // pred_check
      _
    $region11: #{tpu_custom_call.1} parent=1 // pred_check_branch
      %16 = sbr.rel (0) target = $region13
    $region12: #{tpu_custom_call.1} parent=1 // pred_region
      _
    $region13: #{tpu_custom_call.1} parent=1 // pred_fallthru
      _
    // Predicated region
    $region14: #{tpu_custom_call.1} parent=1 // pred_check
      _
    $region15: #{tpu_custom_call.1} parent=1 // pred_check_branch
      %18 = sbr.rel (0) target = $region17
    $region16: #{tpu_custom_call.1} parent=1 // pred_region
      _
    $region17: #{tpu_custom_call.1} parent=1 // pred_fallthru
      _
    // Predicated region
    $region18: #{tpu_custom_call.1} parent=1 // pred_check
      _
    $region19: #{tpu_custom_call.1} parent=1 // pred_check_branch
      %20 = sbr.rel (0) target = $region21
    $region20: #{tpu_custom_call.1} parent=1 // pred_region
      _
    $region21: #{tpu_custom_call.1} parent=1 // pred_fallthru
      _
    %v21 = vld [vmem:[%s1] sm:$0xff]
    %v22 = vld [vmem:[%s1 + $0x8] sm:$0xff]
    %v23 = vld [vmem:[%s1 + $0x10] sm:$0xff]
    %v24 = vld [vmem:[%s1 + $0x18] sm:$0xff]
    %v25 = vld [vmem:[%s2] sm:$0x1]
    %v26 = vld [vmem:[%s3] sm:$0xff]
    %v27 = vld [vmem:[%s3 + $0x8] sm:$0xff]
    %v28 = vld [vmem:[%s3 + $0x10] sm:$0xff]
    %v29 = vld [vmem:[%s3 + $0x18] sm:$0xff]
    %v30 = vld [vmem:[%s3 + $0x20] sm:$0xff]
    %v31 = vld [vmem:[%s3 + $0x28] sm:$0xff]
    %v32 = vld [vmem:[%s3 + $0x30] sm:$0xff]
    %v33 = vld [vmem:[%s3 + $0x38] sm:$0xff]
    %v34 = vld [vmem:[%s3 + $0x40] sm:$0xff]
    %v35 = vld [vmem:[%s3 + $0x48] sm:$0xff]
    %v36 = vld [vmem:[%s3 + $0x50] sm:$0xff]
    %v37 = vld [vmem:[%s3 + $0x58] sm:$0xff]
    %v38 = vld [vmem:[%s3 + $0x60] sm:$0xff]
    %v39 = vld [vmem:[%s3 + $0x68] sm:$0xff]
    %v40 = vld [vmem:[%s3 + $0x70] sm:$0xff]
    %v41 = vld [vmem:[%s3 + $0x78] sm:$0xff]
    %v42 = vld [vmem:[%s4] sm:$0x1]
    %v43 = vld [vmem:[%s0] sm:$0xff]
    %v44 = vld [vmem:[%s0 + $0x8] sm:$0xff]
    %v46 = vperm.slane %v25, 0
    %vm48 = vcmask 261120
    %v50 = vsel %vm48, %v43, 0
    %v53 = vsel %vm48, %v44, 0
    %55 = vmatpush.msra.mxu0 0.0
    %56 = vmatpush.msra.mxu0 0.0
    %57 = vmatpush.msra.mxu0 0.0
    %58 = vmatpush.msra.mxu0 0.0
    %59 = vmatpush.msra.mxu0 0.0
    %60 = vmatpush.msra.mxu0 0.0
    %61 = vmatpush.msra.mxu0 0.0
    %62 = vmatpush.msra.mxu0 0.0
    %63 = vmatpush.msra.mxu0 0.0
    %64 = vmatpush.msra.mxu0 0.0
    %65 = vmatpush.msra.mxu0 0.0
    %66 = vmatpush.msra.mxu0 0.0
    %67 = vmatpush.msra.mxu0 %v24
    %68 = vmatpush.msra.mxu0 %v23
    %69 = vmatpush.msra.mxu0 %v22
    %70 = vmatpush.msra.mxu0 %v21
    %71 = vmatmul.f32.gmra.mxu0 %v50
    %v72 = vpop.f32.mrf.mxu0
    %v73 = vadd.f32 %v46, %v72
    %74 = vmatmul.f32.gmra.mxu0 %v53
    %v75 = vpop.f32.mrf.mxu0
    %v76 = vadd.f32 %v46, %v75
    %77 = vdwg.mxu0
    %v78 = vmul.f32 %v73, 0.5
    %v79 = vmul.f32 %v76, 0.5
    %v80 = vmul.f32 %v73, 0.70710677
    %v81 = vmul.f32 %v76, 0.70710677
    %v82 = vmul.f32 %v80, %v80
    %v83 = vmin.f32 16.0, %v82
    %v84 = vmul.f32 %v83, 2.1237322e-06
    %v85 = vadd.f32 %v84, 0.00028619796
    %v86 = vmul.f32 %v83, %v85
    %v87 = vadd.f32 %v86, 0.0036580483
    %v88 = vmul.f32 %v83, %v87
    %v89 = vadd.f32 %v88, 0.05243302
    %v90 = vmul.f32 %v83, %v89
    %v91 = vadd.f32 %v90, 0.18741608
    %v92 = vmul.f32 %v83, %v91
    %v93 = vadd.f32 %v92, 1.1283791
    %v94 = vmul.f32 %v80, %v93
    %v95 = vmul.f32 %v83, 3.8918573e-05
    %v96 = vadd.f32 %v95, 0.001143296
    %v97 = vmul.f32 %v83, %v96
    %v98 = vadd.f32 %v97, 0.014752088
    %v99 = vmul.f32 %v83, %v98
    %v100 = vadd.f32 %v99, 0.112945676
    %v101 = vmul.f32 %v83, %v100
    %v102 = vadd.f32 %v101, 0.4994258
    %v103 = vmul.f32 %v83, %v102
    %v104 = vadd.f32 %v103, 1.0
    %v105 = vrcp.pop %v104
    %v106 = vmul.f32 %v104, %v105
    %v107 = vsub.f32 1.0, %v106
    %v108 = vmul.f32 %v105, %v107
    %v109 = vadd.f32 %v105, %v108
    %vm110 = vweird.f32 %v104
    %vm111 = vweird.f32 %v105
    %vm112 = vmor %vm110, %vm111
    %v113 = vsel %vm112, %v105, %v109
    %v114 = vand.u32 2147483647, %v104
    %vm115 = vcmp.eq.f32.partialorder %v114, 8.507059e+37
    %v116 = vand.u32 %v104, 2147483648
    %v117 = vor.u32 1.1754944e-38, %v116
    %v118 = vsel %vm115, %v117, %v113
    %v119 = vmul.f32 %v94, %v118
    %v120 = vmin.f32 %v119, 1.0
    %v121 = vmax.f32 %v120, -1.0
    %v122 = vmul.f32 %v81, %v81
    %v123 = vmin.f32 16.0, %v122
    %v124 = vmul.f32 %v123, 2.1237322e-06
    %v125 = vadd.f32 %v124, 0.00028619796
    %v126 = vmul.f32 %v123, %v125
    %v127 = vadd.f32 %v126, 0.0036580483
    %v128 = vmul.f32 %v123, %v127
    %v129 = vadd.f32 %v128, 0.05243302
    %v130 = vmul.f32 %v123, %v129
    %v131 = vadd.f32 %v130, 0.18741608
    %v132 = vmul.f32 %v123, %v131
    %v133 = vadd.f32 %v132, 1.1283791
    %v134 = vmul.f32 %v81, %v133
    %v135 = vmul.f32 %v123, 3.8918573e-05
    %v136 = vadd.f32 %v135, 0.001143296
    %v137 = vmul.f32 %v123, %v136
    %v138 = vadd.f32 %v137, 0.014752088
    %v139 = vmul.f32 %v123, %v138
    %v140 = vadd.f32 %v139, 0.112945676
    %v141 = vmul.f32 %v123, %v140
    %v142 = vadd.f32 %v141, 0.4994258
    %v143 = vmul.f32 %v123, %v142
    %v144 = vadd.f32 %v143, 1.0
    %v145 = vrcp.pop %v144
    %v146 = vmul.f32 %v144, %v145
    %v147 = vsub.f32 1.0, %v146
    %v148 = vmul.f32 %v145, %v147
    %v149 = vadd.f32 %v145, %v148
    %vm150 = vweird.f32 %v144
    %vm151 = vweird.f32 %v145
    %vm152 = vmor %vm150, %vm151
    %v153 = vsel %vm152, %v145, %v149
    %v154 = vand.u32 2147483647, %v144
    %vm155 = vcmp.eq.f32.partialorder %v154, 8.507059e+37
    %v156 = vand.u32 %v144, 2147483648
    %v157 = vor.u32 1.1754944e-38, %v156
    %v158 = vsel %vm155, %v157, %v153
    %v159 = vmul.f32 %v134, %v158
    %v160 = vmin.f32 %v159, 1.0
    %v161 = vmax.f32 %v160, -1.0
    %v162 = vadd.f32 %v121, 1.0
    %v163 = vadd.f32 %v161, 1.0
    %v164 = vmul.f32 %v78, %v162
    %v165 = vmul.f32 %v79, %v163
    %v167 = vperm.slane %v42, 0
    %169 = vmatpush.msra.mxu0 %v41
    %170 = vmatpush.msra.mxu0 %v40
    %171 = vmatpush.msra.mxu0 %v39
    %172 = vmatpush.msra.mxu0 %v38
    %173 = vmatpush.msra.mxu0 %v37
    %174 = vmatpush.msra.mxu0 %v36
    %175 = vmatpush.msra.mxu0 %v35
    %176 = vmatpush.msra.mxu0 %v34
    %177 = vmatpush.msra.mxu0 %v33
    %178 = vmatpush.msra.mxu0 %v32
    %179 = vmatpush.msra.mxu0 %v31
    %180 = vmatpush.msra.mxu0 %v30
    %181 = vmatpush.msra.mxu0 %v29
    %182 = vmatpush.msra.mxu0 %v28
    %183 = vmatpush.msra.mxu0 %v27
    %184 = vmatpush.msra.mxu0 %v26
    %185 = vmatmul.f32.gmra.mxu0 %v164
    %v186 = vpop.f32.mrf.mxu0
    %v187 = vadd.f32 %v167, %v186
    %188 = vmatmul.f32.gmra.mxu0 %v165
    %v189 = vpop.f32.mrf.mxu0
    %v190 = vadd.f32 %v167, %v189
    %191 = vdwg.mxu0
    %192 = vst.msk [vmem:[#allocation2] sm:$0xff] %vm48, %v187
    %193 = vst.msk [vmem:[#allocation2 + $0x8] sm:$0xff] %vm48, %v190
    // Predicated region
    $region22: #{tpu_custom_call.1} parent=1 // pred_check
      _
    $region23: #{tpu_custom_call.1} parent=1 // pred_check_branch
      %195 = sbr.rel (0) target = $region25
    $region24: #{tpu_custom_call.1} parent=1 // pred_region
      %197 = vsyncadd [#allocation3], 0
      %s198 = sshll.u32 [#allocation2], 4
      %s199 = int_to_ptr.vmem [resolvable:$true] %s198
      %s200 = sshll.u32 %s5, 4
      %s201 = int_to_ptr.hbm [resolvable:$true] %s200
      %206 = dma.vmem_to_hbm [thread:$0]  %s199, 256, %s201, [#allocation3], 128, 128, 8
    $region25: #{tpu_custom_call.1} parent=1 // pred_fallthru
      _
    // Predicated region
    $region26: #{tpu_custom_call.1} parent=1 // pred_check
      _
    $region27: #{tpu_custom_call.1} parent=1 // pred_check_branch
      %208 = sbr.rel (0) target = $region29
    $region28: #{tpu_custom_call.1} parent=1 // pred_region
      %210 = dma.done [#allocation3], 256
    $region29: #{tpu_custom_call.1} parent=1 // pred_fallthru
      _
    %211 = vsyncpa [#allocation3], 1

</llo_original>
